<compile_context>
chip_gen: v5e
topology: v5e:2x2
jax: 0.10.0
libtpu: 0.0.40
codegen_flags: <defaults>
</compile_context>

<pallas_src>
import numpy as np
import jax
import jax.numpy as jnp
from jax.experimental import pallas as pl
from jax.experimental.pallas import tpu as pltpu


def create_positional_encoding(embedding_dimension: int, max_sequence_length: int) -> np.ndarray:
    """Vectorized, numerically identical replica of the PyTorch module's table.

    Original loop:  pe[pos, i]   = sin(pos / 10000**(2*i/d))       (i even)
                    pe[pos, i+1] = cos(pos / 10000**(2*(i+1)/d))
    i.e. every column j uses exponent 2*j/d; even columns -> sin, odd -> cos.
    Computed in float64 then cast to float32, exactly like the module.
    """
    assert embedding_dimension % 2 == 0, "original module requires an even embedding_dimension"
    pos = np.arange(max_sequence_length, dtype=np.float64)[:, None]
    col = np.arange(embedding_dimension, dtype=np.float64)[None, :]
    angle = pos / np.power(10000.0, 2.0 * col / embedding_dimension)
    pe = np.where((np.arange(embedding_dimension)[None, :] % 2) == 0,
                  np.sin(angle), np.cos(angle))
    return pe.astype(np.float32)


def _add_pe_kernel(x_ref, pe_ref, o_ref):
    # Pure VPU elementwise add of the positional-table tile onto the token tile.
    # (An in-kernel sin/cos regeneration of the table would drop one of the
    #  three HBM streams; kept as table streaming to preserve the module's
    #  exact float64-built table numerics.)
    o_ref[...] = x_ref[...] + pe_ref[...]


def _pick_row_tile(seq_len: int, emb: int, itemsize: int) -> int:
    """Largest sequence tile that (a) respects the sublane multiple for the
    dtype and (b) keeps 3 streams x 2 pipeline buffers under ~24 MiB VMEM
    (safe inside v7x's 32 MiB scoped default)."""
    sublane = max(8, 32 // max(1, itemsize))          # f32 -> 8, bf16 -> 16, int8/fp8 -> 32
    vmem_budget = 24 << 20
    per_row_bytes = 6 * emb * itemsize                # (x, pe, out) x double-buffer
    cap = max(sublane, vmem_budget // per_row_bytes)
    want = min(512, cap, -(-seq_len // sublane) * sublane)   # round seq_len up to sublane
    return max(sublane, (want // sublane) * sublane)


def positional_encoding_forward(x: jax.Array, pe_table: jax.Array, *, row_tile: int | None = None) -> jax.Array:
    """
    x:        (seq_len, embedding_dim)
    pe_table: (max_sequence_length, embedding_dim), max_sequence_length >= seq_len
    returns:  x + pe_table[:seq_len, :]   (same as the PyTorch forward)
    """
    seq_len, emb = x.shape
    max_seq, emb_pe = pe_table.shape
    assert emb == emb_pe and seq_len <= max_seq

    if pe_table.dtype != x.dtype:
        pe_table = pe_table.astype(x.dtype)

    if row_tile is None:
        row_tile = _pick_row_tile(seq_len, emb, x.dtype.itemsize)
    sublane = max(8, 32 // max(1, x.dtype.itemsize))
    assert row_tile % sublane == 0, f"row_tile must be a multiple of {sublane} for dtype {x.dtype}"

    grid = (pl.cdiv(seq_len, row_tile),)

    return pl.pallas_call(
        _add_pe_kernel,
        out_shape=jax.ShapeDtypeStruct((seq_len, emb), x.dtype),
        grid=grid,
        in_specs=[
            # Token embeddings, tiled along the sequence axis.
            pl.BlockSpec((row_tile, emb), lambda i: (i, 0)),
            # Window straight into the FULL positional table (no lax.slice
            # copy in HBM): block index (i, 0) selects rows [i*T, (i+1)*T).
            pl.BlockSpec((row_tile, emb), lambda i: (i, 0)),
        ],
        out_specs=pl.BlockSpec((row_tile, emb), lambda i: (i, 0)),
        compiler_params=pltpu.CompilerParams(
            # Sequence tiles are independent -> shard across both TCs on v7x.
            dimension_semantics=("parallel",),
        ),
    )(x, pe_table)


if __name__ == "__main__":
    embedding_dimension = 128        # multiple of 128 -> lane-dense stores
    max_sequence_length = 64
    seq_len = 48

    pe_table = jnp.asarray(
        create_positional_encoding(embedding_dimension, max_sequence_length)
    )

    key = jax.random.PRNGKey(0)
    k0, k1 = jax.random.split(key)
    x = jax.random.normal(k0, (seq_len, embedding_dimension), dtype=jnp.float32)

    # Multi-step grid (48 rows / 16-row tiles -> 3 pipelined steps).
    out = positional_encoding_forward(x, pe_table, row_tile=16)
    out = jax.block_until_ready(out)
    ref = x + pe_table[:seq_len, :]
    np.testing.assert_allclose(np.asarray(out), np.asarray(ref), rtol=1e-6, atol=1e-6)

    # Small-sequence case with the automatic tile pick (single grid step).
    x2 = jax.random.normal(k1, (8, embedding_dimension), dtype=jnp.float32)
    out2 = jax.block_until_ready(positional_encoding_forward(x2, pe_table))
    np.testing.assert_allclose(
        np.asarray(out2), np.asarray(x2 + pe_table[:8, :]), rtol=1e-6, atol=1e-6
    )

    print("KERNEL_OK")
</pallas_src>

<mosaic_0001>
module attributes {stable_mosaic.version = 11 : i64} {
  func.func @_add_pe_kernel(%arg0: i32, %arg1: memref<16x128xf32, #tpu.memory_space<vmem>>, %arg2: memref<16x128xf32, #tpu.memory_space<vmem>>, %arg3: memref<16x128xf32, #tpu.memory_space<vmem>>) attributes {dimension_semantics = [#tpu.dimension_semantics<parallel>], iteration_bounds = array<i64: 3>, scalar_prefetch = 0 : i64, scratch_operands = 0 : i64, tpu.core_type = #tpu.core_type<tc>, window_params = [{transform_indices = @transform_0, window_bounds = array<i64: 16, 128>}, {transform_indices = @transform_1, window_bounds = array<i64: 16, 128>}, {transform_indices = @transform_2, window_bounds = array<i64: 16, 128>}]} {
    %c0 = arith.constant 0 : index
    %c0_0 = arith.constant 0 : index
    %0 = vector.load %arg1[%c0, %c0_0] : memref<16x128xf32, #tpu.memory_space<vmem>>, vector<16x128xf32>
    %c0_1 = arith.constant 0 : index
    %c0_2 = arith.constant 0 : index
    %1 = vector.load %arg2[%c0_1, %c0_2] : memref<16x128xf32, #tpu.memory_space<vmem>>, vector<16x128xf32>
    %2 = arith.addf %0, %1 : vector<16x128xf32>
    %c0_3 = arith.constant 0 : index
    %c0_4 = arith.constant 0 : index
    %3 = vector.load %arg3[%c0_3, %c0_4] : memref<16x128xf32, #tpu.memory_space<vmem>>, vector<16x128xf32>
    tpu.vector_store %arg3[%c0_3, %c0_4], %2 {strides = array<i32>} : memref<16x128xf32, #tpu.memory_space<vmem>>, vector<16x128xf32>,
    return
  }
  func.func @transform_0(%arg0: i32) -> (i32, i32) {
    %c0_i32 = arith.constant 0 : i32
    %c0_i32_0 = arith.constant 0 : i32
    return %arg0, %c0_i32 : i32, i32
  }
  func.func @transform_1(%arg0: i32) -> (i32, i32) {
    %c0_i32 = arith.constant 0 : i32
    %c0_i32_0 = arith.constant 0 : i32
    return %arg0, %c0_i32 : i32, i32
  }
  func.func @transform_2(%arg0: i32) -> (i32, i32) {
    %c0_i32 = arith.constant 0 : i32
    %c0_i32_0 = arith.constant 0 : i32
    return %arg0, %c0_i32 : i32, i32
  }
}

</mosaic_0001>

<llo_original>
// kernel: tpu_custom_call.1
$region0: #{tpu_custom_call.1}
  #allocation0 [shape = 'u32[]', space=smem, size = 0x4, offset = 0x4, fixed_abs, tag = 'smem constant byte address 0x4 - core index']
  #allocation1 [shape = 'u32[72,128]{1,0:T(1,128)}', space=vmem, size = 0x9000, scoped, tag = 'internal scratch']
  %s0 = inlined_call_operand.hbm [shape: f32[48,128], index: 0, kind: input, shape index: {}]
  %s1 = inlined_call_operand.hbm [shape: f32[64,128], index: 1, kind: input, shape index: {}]
  %s2 = inlined_call_operand.hbm [shape: f32[48,128], index: 2, kind: output, shape index: {}]
  %s3 = sld [smem:[#allocation0]]
  $region49: #{tpu_custom_call.1} parent=0
    _
  %s5 = ssub.s32 1, %s3
  %s6 = scalar_select 0, %s5, %s3
  $region1: #{tpu_custom_call.1} parent=0
    #allocation2 [shape = 'u8[16384]{0}', space=vmem, size = 0x4000, scoped, tag = 'input window, operand 0']
    #allocation3 [shape = 's32[2]{0}', space=sflag, size = 0x8, scoped, tag = 'scoped memory for tpu_custom_call.1']
    #allocation4 [shape = 's32[2]{0}', space=sflag, size = 0x8, scoped, tag = 'scoped memory for tpu_custom_call.1']
    #allocation5 [shape = 'u8[16384]{0}', space=vmem, size = 0x4000, scoped, tag = 'input window, operand 1']
    #allocation6 [shape = 's32[2]{0}', space=sflag, size = 0x8, scoped, tag = 'scoped memory for tpu_custom_call.1']
    #allocation7 [shape = 'u8[16384]{0}', space=vmem, size = 0x4000, scoped, tag = 'output window, operand 0']
    %7 = vsyncpa [#allocation3], 0
    %s8 = scalar_lea.sflag [#allocation3], 1
    %9 = vsyncpa %s8, 0
    %10 = vsyncpa [#allocation6], 0
    %s11 = scalar_lea.sflag [#allocation6], 1
    %12 = vsyncpa %s11, 0
    %13 = vsyncpa [#allocation4], 0
    %s14 = scalar_lea.sflag [#allocation4], 1
    %15 = vsyncpa %s14, 0
    loop: start=0, step=1, limit=5
    $region2: #{tpu_custom_call.1} parent=1 // loop_pre_header
      _
    $region3: #{tpu_custom_call.1} parent=1 // loop_header
      %s17 = sphi 0, %s21
      %p18 = scmp.ge.s32.totalorder %s17, 5
      %s27 = sphi 0, %s29
      %s30 = sphi 0, %s27
      %s31 = sphi 0, %s30
      %s47 = sphi 0, %s31
      %s53 = sphi 0, %s55
      %s56 = sphi 0, %s53
      %s57 = sphi 0, %s56
      %s73 = sphi 0, %s57
      %s79 = sphi 0, %s81
      %s82 = sphi 0, %s79
      %s83 = sphi 0, %s82
      %s99 = sphi 0, %s83
    $region4: #{tpu_custom_call.1} parent=1 // loop_header_branch
      %20 = sbr.rel (%p18) target = $region8
    $region5: #{tpu_custom_call.1} parent=1 // loop_body
      %s22 = ssub.s32 %s17, 1
      %s23 = ssub.s32 %s17, 2
      %s24 = sadd.s32 %s17, 1
      %s25 = ssub.s32 %s17, %s24
      %p26 = scmp.eq.s32.totalorder %s25, 0
      %s28 = sadd.s32 %s27, 1
      %s29 = scalar_select %p26, %s27, %s28
      %p32 = pneg %p26
      %p33 = scmp.eq.s32.totalorder %s17, 2
      %p34 = por %p32, %p33
      %p35 = scmp.ne.s32.totalorder %s27, %s30
      %p36 = scmp.eq.s32.totalorder %s17, 0
      %p37 = por %p35, %p36
      %p38 = scmp.ne.s32.totalorder %s27, %s30
      %p39 = scmp.eq.s32.totalorder %s22, 2
      %p40 = por %p38, %p39
      %p41 = scmp.ne.s32.totalorder %s30, %s31
      %p42 = scmp.eq.s32.totalorder %s22, 0
      %p43 = por %p41, %p42
      %p44 = scmp.ne.s32.totalorder %s30, %s31
      %p45 = scmp.eq.s32.totalorder %s23, 2
      %p46 = por %p44, %p45
      %p48 = scmp.ne.s32.totalorder %s31, %s47
      %p49 = scmp.eq.s32.totalorder %s23, 0
      %p50 = por %p48, %p49
      %s51 = ssub.s32 %s17, %s24
      %p52 = scmp.eq.s32.totalorder %s51, 0
      %s54 = sadd.s32 %s53, 1
      %s55 = scalar_select %p52, %s53, %s54
      %p58 = pneg %p52
      %p59 = scmp.eq.s32.totalorder %s17, 2
      %p60 = por %p58, %p59
      %p61 = scmp.ne.s32.totalorder %s53, %s56
      %p62 = scmp.eq.s32.totalorder %s17, 0
      %p63 = por %p61, %p62
      %p64 = scmp.ne.s32.totalorder %s53, %s56
      %p65 = scmp.eq.s32.totalorder %s22, 2
      %p66 = por %p64, %p65
      %p67 = scmp.ne.s32.totalorder %s56, %s57
      %p68 = scmp.eq.s32.totalorder %s22, 0
      %p69 = por %p67, %p68
      %p70 = scmp.ne.s32.totalorder %s56, %s57
      %p71 = scmp.eq.s32.totalorder %s23, 2
      %p72 = por %p70, %p71
      %p74 = scmp.ne.s32.totalorder %s57, %s73
      %p75 = scmp.eq.s32.totalorder %s23, 0
      %p76 = por %p74, %p75
      %s77 = ssub.s32 %s17, %s24
      %p78 = scmp.eq.s32.totalorder %s77, 0
      %s80 = sadd.s32 %s79, 1
      %s81 = scalar_select %p78, %s79, %s80
      %p84 = pneg %p78
      %p85 = scmp.eq.s32.totalorder %s17, 2
      %p86 = por %p84, %p85
      %p87 = scmp.ne.s32.totalorder %s79, %s82
      %p88 = scmp.eq.s32.totalorder %s17, 0
      %p89 = por %p87, %p88
      %p90 = scmp.ne.s32.totalorder %s79, %s82
      %p91 = scmp.eq.s32.totalorder %s22, 2
      %p92 = por %p90, %p91
      %p93 = scmp.ne.s32.totalorder %s82, %s83
      %p94 = scmp.eq.s32.totalorder %s22, 0
      %p95 = por %p93, %p94
      %p96 = scmp.ne.s32.totalorder %s82, %s83
      %p97 = scmp.eq.s32.totalorder %s23, 2
      %p98 = por %p96, %p97
      %p100 = scmp.ne.s32.totalorder %s83, %s99
      %p101 = scmp.eq.s32.totalorder %s23, 0
      %p102 = por %p100, %p101
      %p103 = scmp.le.s32.totalorder 1, %s17
      %p104 = scmp.lt.s32.totalorder %s17, 4
      %p105 = pnand %p103, %p104
      %p106 = pneg %p105
      // Predicated region
      $region9: #{tpu_custom_call.1} parent=5 // pred_check
        _
      $region10: #{tpu_custom_call.1} parent=5 // pred_check_branch
        %108 = sbr.rel (%p105) target = $region12
      $region11: #{tpu_custom_call.1} parent=5 // pred_region
        %s109 = ssub.s32 %s17, 1
      $region12: #{tpu_custom_call.1} parent=5 // pred_fallthru
        _
      %p110 = scmp.lt.s32.totalorder %s17, 3
      // Predicated region
      $region13: #{tpu_custom_call.1} parent=5 // pred_check
        %p111 = pneg %p110
      $region14: #{tpu_custom_call.1} parent=5 // pred_check_branch
        %113 = sbr.rel (%p111) target = $region16
      $region15: #{tpu_custom_call.1} parent=5 // pred_region
        // Predicated region
        $region17: #{tpu_custom_call.1} parent=15 // pred_check
          %p114 = pneg %p37
        $region18: #{tpu_custom_call.1} parent=15 // pred_check_branch
          %116 = sbr.rel (%p114) target = $region20
        $region19: #{tpu_custom_call.1} parent=15 // pred_region
          %s117 = sand.u32 %s27, 1
          %s118 = scalar_lea.sflag [#allocation3], %s117
          %s119 = sand.u32 %s27, 1
          %s120 = smul.addr %s119, 16
          %s121 = scalar_lea.vmem [#allocation2], %s120
          %s122 = smul.u32 2, %s17
          %124 = vsyncadd %s118, 0
          %s125 = smul.addr %s122, 8
          %s126 = scalar_lea.hbm %s0, %s125
          %s127 = sshll.u32 %s126, 4
          %s128 = int_to_ptr.hbm [resolvable:$true] %s127
          %s129 = sshll.u32 %s121, 4
          %s130 = int_to_ptr.vmem [resolvable:$true] %s129
          %135 = dma.hbm_to_vmem [thread:$0]  %s128, 256, %s130, %s118, 128, 128, 8
        $region20: #{tpu_custom_call.1} parent=15 // pred_fallthru
          _
        // Predicated region
        $region21: #{tpu_custom_call.1} parent=15 // pred_check
          %p136 = pneg %p63
        $region22: #{tpu_custom_call.1} parent=15 // pred_check_branch
          %138 = sbr.rel (%p136) target = $region24
        $region23: #{tpu_custom_call.1} parent=15 // pred_region
          %s139 = sand.u32 %s53, 1
          %s140 = scalar_lea.sflag [#allocation6], %s139
          %s141 = sand.u32 %s53, 1
          %s142 = smul.addr %s141, 16
          %s143 = scalar_lea.vmem [#allocation5], %s142
          %s144 = smul.u32 2, %s17
          %146 = vsyncadd %s140, 0
          %s147 = smul.addr %s144, 8
          %s148 = scalar_lea.hbm %s1, %s147
          %s149 = sshll.u32 %s148, 4
          %s150 = int_to_ptr.hbm [resolvable:$true] %s149
          %s151 = sshll.u32 %s143, 4
          %s152 = int_to_ptr.vmem [resolvable:$true] %s151
          %157 = dma.hbm_to_vmem [thread:$0]  %s150, 256, %s152, %s140, 128, 128, 8
        $region24: #{tpu_custom_call.1} parent=15 // pred_fallthru
          _
      $region16: #{tpu_custom_call.1} parent=5 // pred_fallthru
        _
      %p158 = scmp.le.s32.totalorder 1, %s17
      %p159 = scmp.lt.s32.totalorder %s17, 4
      %p160 = pnand %p158, %p159
      %p161 = pneg %p160
      // Predicated region
      $region25: #{tpu_custom_call.1} parent=5 // pred_check
        _
      $region26: #{tpu_custom_call.1} parent=5 // pred_check_branch
        %163 = sbr.rel (%p160) target = $region28
      $region27: #{tpu_custom_call.1} parent=5 // pred_region
        %s164 = ssub.s32 %s17, 1
        %s165 = sand.u32 %s30, 1
        %s166 = scalar_lea.sflag [#allocation3], %s165
        %s167 = sand.u32 %s30, 1
        %s168 = smul.addr %s167, 16
        %s169 = scalar_lea.vmem [#allocation2], %s168
        // Predicated region
        $region29: #{tpu_custom_call.1} parent=27 // pred_check
          %p170 = pneg %p43
        $region30: #{tpu_custom_call.1} parent=27 // pred_check_branch
          %172 = sbr.rel (%p170) target = $region32
        $region31: #{tpu_custom_call.1} parent=27 // pred_region
          %174 = dma.done %s166, 256
        $region32: #{tpu_custom_call.1} parent=27 // pred_fallthru
          _
        %s175 = sand.u32 %s56, 1
        %s176 = scalar_lea.sflag [#allocation6], %s175
        %s177 = sand.u32 %s56, 1
        %s178 = smul.addr %s177, 16
        %s179 = scalar_lea.vmem [#allocation5], %s178
        // Predicated region
        $region33: #{tpu_custom_call.1} parent=27 // pred_check
          %p180 = pneg %p69
        $region34: #{tpu_custom_call.1} parent=27 // pred_check_branch
          %182 = sbr.rel (%p180) target = $region36
        $region35: #{tpu_custom_call.1} parent=27 // pred_region
          %184 = dma.done %s176, 256
        $region36: #{tpu_custom_call.1} parent=27 // pred_fallthru
          _
        %s185 = sand.u32 %s30, 1
        %s186 = scalar_lea.sflag [#allocation3], %s185
        %s187 = sand.u32 %s30, 1
        %s188 = smul.addr %s187, 16
        %s189 = scalar_lea.vmem [#allocation2], %s188
        %p190 = pneg %p43
        %p191 = pneg %p40
        %s192 = sand.u32 %s56, 1
        %s193 = scalar_lea.sflag [#allocation6], %s192
        %s194 = sand.u32 %s56, 1
        %s195 = smul.addr %s194, 16
        %s196 = scalar_lea.vmem [#allocation5], %s195
        %p197 = pneg %p69
        %p198 = pneg %p66
        %p199 = pneg %p95
        %p200 = pneg %p92
        %s201 = sand.u32 %s82, 1
        %s202 = scalar_lea.sflag [#allocation4], %s201
        %s203 = sand.u32 %s82, 1
        %s204 = smul.addr %s203, 16
        %s205 = scalar_lea.vmem [#allocation7], %s204
        %s206 = smul.u32 2, %s22
        %s207 = smul.u32 2, %s22
        %s208 = smul.u32 2, %s22
        %v209 = vld [vmem:[%s169] sm:$0xff]
        %v210 = vld [vmem:[%s169 + $0x8] sm:$0xff]
        %v211 = vld [vmem:[%s179] sm:$0xff]
        %v212 = vld [vmem:[%s179 + $0x8] sm:$0xff]
        %v213 = vadd.f32 %v209, %v211
        %v214 = vadd.f32 %v210, %v212
        %215 = vst [vmem:[%s205] sm:$0xff] %v213
        %216 = vst [vmem:[%s205 + $0x8] sm:$0xff] %v214
        %s217 = sand.u32 %s82, 1
        %s218 = scalar_lea.sflag [#allocation4], %s217
        %s219 = sand.u32 %s82, 1
        %s220 = smul.addr %s219, 16
        %s221 = scalar_lea.vmem [#allocation7], %s220
        // Predicated region
        $region37: #{tpu_custom_call.1} parent=27 // pred_check
          %p222 = pneg %p92
        $region38: #{tpu_custom_call.1} parent=27 // pred_check_branch
          %224 = sbr.rel (%p222) target = $region40
        $region39: #{tpu_custom_call.1} parent=27 // pred_region
          %s225 = smul.u32 2, %s22
          %227 = vsyncadd %s218, 0
          %s228 = smul.addr %s225, 8
          %s229 = scalar_lea.hbm %s2, %s228
          %s230 = sshll.u32 %s221, 4
          %s231 = int_to_ptr.vmem [resolvable:$true] %s230
          %s232 = sshll.u32 %s229, 4
          %s233 = int_to_ptr.hbm [resolvable:$true] %s232
          %238 = dma.vmem_to_hbm [thread:$0]  %s231, 256, %s233, %s218, 128, 128, 8
        $region40: #{tpu_custom_call.1} parent=27 // pred_fallthru
          _
      $region28: #{tpu_custom_call.1} parent=5 // pred_fallthru
        _
      %p239 = scmp.le.s32.totalorder 2, %s17
      // Predicated region
      $region41: #{tpu_custom_call.1} parent=5 // pred_check
        %p240 = pneg %p239
      $region42: #{tpu_custom_call.1} parent=5 // pred_check_branch
        %242 = sbr.rel (%p240) target = $region44
      $region43: #{tpu_custom_call.1} parent=5 // pred_region
        %s243 = ssub.s32 %s17, 2
        // Predicated region
        $region45: #{tpu_custom_call.1} parent=43 // pred_check
          %p244 = pneg %p98
        $region46: #{tpu_custom_call.1} parent=43 // pred_check_branch
          %246 = sbr.rel (%p244) target = $region48
        $region47: #{tpu_custom_call.1} parent=43 // pred_region
          %s247 = sand.u32 %s83, 1
          %s248 = scalar_lea.sflag [#allocation4], %s247
          %s249 = sand.u32 %s83, 1
          %s250 = smul.addr %s249, 16
          %s251 = scalar_lea.vmem [#allocation7], %s250
          %253 = dma.done %s248, 256
        $region48: #{tpu_custom_call.1} parent=43 // pred_fallthru
          _
      $region44: #{tpu_custom_call.1} parent=5 // pred_fallthru
        _
    $region6: #{tpu_custom_call.1} parent=1 // loop_footer
      %s21 = sadd.s32 1, %s17
    $region7: #{tpu_custom_call.1} parent=1 // loop_footer_branch
      %16 = sbr.rel target = $region3
    $region8: #{tpu_custom_call.1} parent=1 // loop_exit
      _
    %254 = vsyncpa [#allocation3], 1
    %s255 = scalar_lea.sflag [#allocation3], 1
    %256 = vsyncpa %s255, 1
    %257 = vsyncpa [#allocation6], 1
    %s258 = scalar_lea.sflag [#allocation6], 1
    %259 = vsyncpa %s258, 1
    %260 = vsyncpa [#allocation4], 1
    %s261 = scalar_lea.sflag [#allocation4], 1
    %262 = vsyncpa %s261, 1

</llo_original>
